<compile_context>
chip_gen: v5e
topology: v5e:2x2
jax: 0.10.0
libtpu: 0.0.40
codegen_flags: <defaults>
</compile_context>

<pallas_src>
import jax
import jax.numpy as jnp
from jax import lax
from jax.experimental import pallas as pl
from jax.experimental.pallas import tpu as pltpu


def _critic_kernel(x_ref, act_ref, w1a_ref, w1b_ref, b1_ref,
                   w2_ref, b2_ref, w3_ref, b3_ref, o_ref):
    # Layer 1 with the concat fused in: h = x @ W1a + act @ W1b + b1, ReLU.
    h = jnp.dot(x_ref[...], w1a_ref[...], preferred_element_type=jnp.float32)
    h = h + jnp.dot(act_ref[...], w1b_ref[...],
                    preferred_element_type=jnp.float32)
    h = jnp.maximum(h + b1_ref[...], 0.0)

    # Layer 2: matmul in the streaming dtype (bf16 by default, halves the
    # operand footprint); accumulation, bias add and ReLU stay f32 on the VPU.
    h = jnp.dot(h.astype(w2_ref.dtype), w2_ref[...],
                preferred_element_type=jnp.float32)
    h = jnp.maximum(h + b2_ref[...], 0.0)

    # Layer 3 (H -> 1), lane-dense: contract the H axis of w3 [1, H] against
    # the H axis of h [TB, H] -> [1, TB] row, so the output store is a
    # full-lane vst instead of TB masked single-lane stores of a [TB, 1]
    # column.  b3 is a scalar read from SMEM.
    o = lax.dot_general(w3_ref[...], h,
                        dimension_numbers=(((1,), (1,)), ((), ())),
                        preferred_element_type=jnp.float32)
    o_ref[...] = (o + b3_ref[0, 0]).astype(o_ref.dtype)


def _round_up(x, m):
    return ((x + m - 1) // m) * m


def _pick_batch_tile(batch):
    # Output blocks are [1, TB] (lane-dense), so TB must be a multiple of 128
    # or equal the whole batch.  For B <= 128 use a single tile; otherwise use
    # a 128-lane-aligned tile sized for >= 2 grid steps (so v7x can shard the
    # 'parallel' batch axis across both TensorCores), capped at 2048 rows.
    # Per-step VMEM stays tiny either way; this is about amortizing the
    # ~0.35 us per-grid-step overhead vs. megacore occupancy.
    if batch <= 128:
        return batch
    return min(2048, max(128, _round_up(pl.cdiv(batch, 2), 128)))


def critic_forward(x, act, params, *, use_bf16=True, batch_tile=None):
    """x: [B, n_input], act: [B, n_rec_prod] -> [B, 1] float32."""
    w1a, w1b, b1, w2, b2, w3, b3 = params
    B, n_input = x.shape
    n_rec_prod = act.shape[1]
    H = w1a.shape[1]

    # bf16 streaming (default): halves HBM bytes of the dominant activation
    # stream and the layer-1/2 matmul operands; MXU-native on v6e/v7x and
    # supported on v5e.  Accumulation / biases / final layer stay f32, so
    # elementwise work is f32 on every chip.  (The astype here is one extra
    # cast pass unless it fuses into the upstream producer -- acceptable.)
    mm_dtype = jnp.bfloat16 if use_bf16 else jnp.float32
    x = x.astype(mm_dtype)
    act = act.astype(mm_dtype)
    w1a = w1a.astype(mm_dtype)
    w1b = w1b.astype(mm_dtype)
    w2 = w2.astype(mm_dtype)
    b1 = b1.astype(jnp.float32)
    b2 = b2.astype(jnp.float32)
    w3 = w3.astype(jnp.float32)
    b3 = b3.astype(jnp.float32)

    TB = batch_tile if batch_tile is not None else _pick_batch_tile(B)
    grid = (pl.cdiv(B, TB),)

    # Activations stream over the batch grid; weights/biases stay VMEM-
    # resident (constant index_map) with default 2-deep pipelining.
    x_spec = pl.BlockSpec((TB, n_input), lambda i: (i, 0))
    act_spec = pl.BlockSpec((TB, n_rec_prod), lambda i: (i, 0))
    w1a_spec = pl.BlockSpec((n_input, H), lambda i: (0, 0))
    w1b_spec = pl.BlockSpec((n_rec_prod, H), lambda i: (0, 0))
    b1_spec = pl.BlockSpec((1, H), lambda i: (0, 0))
    w2_spec = pl.BlockSpec((H, H), lambda i: (0, 0))
    b2_spec = pl.BlockSpec((1, H), lambda i: (0, 0))
    w3_spec = pl.BlockSpec((1, H), lambda i: (0, 0))
    b3_spec = pl.BlockSpec(memory_space=pltpu.MemorySpace.SMEM)  # scalar bias
    # Lane-dense output: one [1, B] row, blocked along lanes.
    out_spec = pl.BlockSpec((1, TB), lambda i: (0, i))

    act_itemsize = jnp.dtype(mm_dtype).itemsize
    weight_bytes = sum(int(p.size) * p.dtype.itemsize
                       for p in (w1a, w1b, b1, w2, b2, w3, b3))
    cost = pl.CostEstimate(
        flops=2 * B * ((n_input + n_rec_prod) * H + H * H + H),
        transcendentals=0,
        bytes_accessed=B * (n_input + n_rec_prod) * act_itemsize
        + B * 4 + weight_bytes,
    )

    out_row = pl.pallas_call(
        _critic_kernel,
        out_shape=jax.ShapeDtypeStruct((1, B), jnp.float32),
        grid=grid,
        in_specs=[x_spec, act_spec, w1a_spec, w1b_spec, b1_spec,
                  w2_spec, b2_spec, w3_spec, b3_spec],
        out_specs=out_spec,
        compiler_params=pltpu.CompilerParams(
            dimension_semantics=("parallel",)),
        cost_estimate=cost,
    )(x, act, w1a, w1b, b1, w2, b2, w3, b3)

    # (1, B) -> (B, 1): same HBM bytes, metadata-only reshape.
    return out_row.reshape(B, 1)


def init_critic_params(key, n_input, n_rec_prod):
    """Mirror nn.Linear default init (uniform +/- 1/sqrt(fan_in)).
    W1 is stored split as W1a [n_input, H] / W1b [n_rec_prod, H] (concat
    fusion); W2 as [H, H]; W3 as a [1, H] row; biases as [1, out]."""
    in_dim = n_input + n_rec_prod
    H = 4 * in_dim
    dims = [(in_dim, H), (H, H), (H, 1)]
    keys = jax.random.split(key, 2 * len(dims))
    raw = []
    for i, (fan_in, fan_out) in enumerate(dims):
        bound = 1.0 / (fan_in ** 0.5)
        w = jax.random.uniform(keys[2 * i], (fan_in, fan_out),
                               minval=-bound, maxval=bound, dtype=jnp.float32)
        b = jax.random.uniform(keys[2 * i + 1], (1, fan_out),
                               minval=-bound, maxval=bound, dtype=jnp.float32)
        raw += [w, b]
    w1, b1, w2, b2, w3, b3 = raw
    return (w1[:n_input], w1[n_input:], b1, w2, b2, w3.T, b3)


def critic_reference(x, act, params):
    """Pure-JAX reference for verification (matches the PyTorch forward)."""
    w1a, w1b, b1, w2, b2, w3, b3 = params
    h = jnp.concatenate([x, act], axis=-1)
    w1 = jnp.concatenate([w1a, w1b], axis=0)
    h = jnp.maximum(h @ w1 + b1, 0.0)
    h = jnp.maximum(h @ w2 + b2, 0.0)
    return h @ w3.T + b3


if __name__ == "__main__":
    # Small shapes consistent with the module: n_input=8, n_rec_prod=8
    # -> in_dim=16, hidden=64, output=1.
    B, n_input, n_rec_prod = 8, 8, 8

    key = jax.random.PRNGKey(0)
    k_x, k_a, k_p = jax.random.split(key, 3)
    x = jax.random.normal(k_x, (B, n_input), dtype=jnp.float32)
    act = jax.random.normal(k_a, (B, n_rec_prod), dtype=jnp.float32)
    params = init_critic_params(k_p, n_input, n_rec_prod)

    ref = critic_reference(x, act, params)

    # f32 path (tight tolerance), single-tile grid, lane-dense output.
    out_f32 = jax.block_until_ready(
        critic_forward(x, act, params, use_bf16=False))
    assert out_f32.shape == (B, 1), out_f32.shape
    assert jnp.allclose(out_f32, ref, atol=1e-5, rtol=1e-5), \
        "f32 mismatch vs reference"

    # Default path: bf16 streaming for the matmuls, f32 accumulation.
    out_bf16 = jax.block_until_ready(critic_forward(x, act, params))
    assert out_bf16.shape == (B, 1), out_bf16.shape
    assert jnp.allclose(out_bf16, ref, atol=5e-2, rtol=5e-2), \
        "bf16 mismatch vs reference"

    # Multi-tile grid with a partial last block: B=300 -> TB=256 -> 2 steps,
    # lane-dense [1, 256] output blocks, last block masked on writeback.
    B2 = 300
    k_x2, k_a2 = jax.random.split(jax.random.PRNGKey(1))
    x2 = jax.random.normal(k_x2, (B2, n_input), dtype=jnp.float32)
    act2 = jax.random.normal(k_a2, (B2, n_rec_prod), dtype=jnp.float32)
    ref2 = critic_reference(x2, act2, params)

    out2 = jax.block_until_ready(
        critic_forward(x2, act2, params, use_bf16=False))
    assert out2.shape == (B2, 1), out2.shape
    assert jnp.allclose(out2, ref2, atol=1e-5, rtol=1e-5), \
        "tiled mismatch vs reference"

    # Explicit 128-row tiles -> 3 grid steps (also the v7x megacore shape).
    out3 = jax.block_until_ready(
        critic_forward(x2, act2, params, use_bf16=False, batch_tile=128))
    assert jnp.allclose(out3, ref2, atol=1e-5, rtol=1e-5), \
        "tiled(128) mismatch vs reference"

    print("KERNEL_OK")
</pallas_src>

<mosaic_0001>
module attributes {stable_mosaic.version = 11 : i64} {
  func.func @_critic_kernel(%arg0: i32, %arg1: memref<8x8xf32, #tpu.memory_space<vmem>>, %arg2: memref<8x8xf32, #tpu.memory_space<vmem>>, %arg3: memref<8x64xf32, #tpu.memory_space<vmem>>, %arg4: memref<8x64xf32, #tpu.memory_space<vmem>>, %arg5: memref<1x64xf32, #tpu.memory_space<vmem>>, %arg6: memref<64x64xf32, #tpu.memory_space<vmem>>, %arg7: memref<1x64xf32, #tpu.memory_space<vmem>>, %arg8: memref<1x64xf32, #tpu.memory_space<vmem>>, %arg9: memref<1x1xf32, #tpu.memory_space<smem>>, %arg10: memref<1x8xf32, #tpu.memory_space<vmem>>) attributes {dimension_semantics = [#tpu.dimension_semantics<parallel>], iteration_bounds = array<i64: 1>, scalar_prefetch = 0 : i64, scratch_operands = 0 : i64, tpu.core_type = #tpu.core_type<tc>, window_params = [{transform_indices = @transform_0, window_bounds = array<i64: 8, 8>}, {transform_indices = @transform_1, window_bounds = array<i64: 8, 8>}, {pipeline_mode = #tpu.pipeline_mode<synchronous>, transform_indices = @transform_2, window_bounds = array<i64: 8, 64>}, {pipeline_mode = #tpu.pipeline_mode<synchronous>, transform_indices = @transform_3, window_bounds = array<i64: 8, 64>}, {pipeline_mode = #tpu.pipeline_mode<synchronous>, transform_indices = @transform_4, window_bounds = array<i64: 1, 64>}, {pipeline_mode = #tpu.pipeline_mode<synchronous>, transform_indices = @transform_5, window_bounds = array<i64: 64, 64>}, {pipeline_mode = #tpu.pipeline_mode<synchronous>, transform_indices = @transform_6, window_bounds = array<i64: 1, 64>}, {pipeline_mode = #tpu.pipeline_mode<synchronous>, transform_indices = @transform_7, window_bounds = array<i64: 1, 64>}, {transform_indices = @transform_8, window_bounds = array<i64: 1, 1>}, {transform_indices = @transform_9, window_bounds = array<i64: 1, 8>}]} {
    %c0 = arith.constant 0 : index
    %c0_0 = arith.constant 0 : index
    %0 = vector.load %arg1[%c0, %c0_0] : memref<8x8xf32, #tpu.memory_space<vmem>>, vector<8x8xf32>
    %c0_1 = arith.constant 0 : index
    %c0_2 = arith.constant 0 : index
    %1 = vector.load %arg3[%c0_1, %c0_2] : memref<8x64xf32, #tpu.memory_space<vmem>>, vector<8x64xf32>
    %cst = arith.constant dense<0.000000e+00> : vector<8x64xf32>
    %2 = tpu.matmul %0, %1, %cst {dimension_numbers = #tpu.dot_dimension_numbers<[1], [0], [0], [1], [0, 0, 1, 1], [], []>} : vector<8x8xf32>, vector<8x64xf32>, vector<8x64xf32> -> vector<8x64xf32>
    %c0_3 = arith.constant 0 : index
    %c0_4 = arith.constant 0 : index
    %3 = vector.load %arg2[%c0_3, %c0_4] : memref<8x8xf32, #tpu.memory_space<vmem>>, vector<8x8xf32>
    %c0_5 = arith.constant 0 : index
    %c0_6 = arith.constant 0 : index
    %4 = vector.load %arg4[%c0_5, %c0_6] : memref<8x64xf32, #tpu.memory_space<vmem>>, vector<8x64xf32>
    %cst_7 = arith.constant dense<0.000000e+00> : vector<8x64xf32>
    %5 = tpu.matmul %3, %4, %cst_7 {dimension_numbers = #tpu.dot_dimension_numbers<[1], [0], [0], [1], [0, 0, 1, 1], [], []>} : vector<8x8xf32>, vector<8x64xf32>, vector<8x64xf32> -> vector<8x64xf32>
    %6 = arith.addf %2, %5 : vector<8x64xf32>
    %c0_8 = arith.constant 0 : index
    %c0_9 = arith.constant 0 : index
    %7 = vector.load %arg5[%c0_8, %c0_9] : memref<1x64xf32, #tpu.memory_space<vmem>>, vector<1x64xf32>
    %8 = vector.broadcast %7 : vector<1x64xf32> to vector<8x64xf32>
    %9 = arith.addf %6, %8 : vector<8x64xf32>
    %cst_10 = arith.constant 0.000000e+00 : f32
    %10 = vector.broadcast %cst_10 : f32 to vector<8x64xf32>
    %11 = arith.maximumf %9, %10 : vector<8x64xf32>
    %c0_11 = arith.constant 0 : index
    %c0_12 = arith.constant 0 : index
    %12 = vector.load %arg6[%c0_11, %c0_12] : memref<64x64xf32, #tpu.memory_space<vmem>>, vector<64x64xf32>
    %cst_13 = arith.constant dense<0.000000e+00> : vector<8x64xf32>
    %13 = tpu.matmul %11, %12, %cst_13 {dimension_numbers = #tpu.dot_dimension_numbers<[1], [0], [0], [1], [0, 0, 1, 1], [], []>} : vector<8x64xf32>, vector<64x64xf32>, vector<8x64xf32> -> vector<8x64xf32>
    %c0_14 = arith.constant 0 : index
    %c0_15 = arith.constant 0 : index
    %14 = vector.load %arg7[%c0_14, %c0_15] : memref<1x64xf32, #tpu.memory_space<vmem>>, vector<1x64xf32>
    %15 = vector.broadcast %14 : vector<1x64xf32> to vector<8x64xf32>
    %16 = arith.addf %13, %15 : vector<8x64xf32>
    %cst_16 = arith.constant 0.000000e+00 : f32
    %17 = vector.broadcast %cst_16 : f32 to vector<8x64xf32>
    %18 = arith.maximumf %16, %17 : vector<8x64xf32>
    %c0_17 = arith.constant 0 : index
    %c0_18 = arith.constant 0 : index
    %19 = vector.load %arg8[%c0_17, %c0_18] : memref<1x64xf32, #tpu.memory_space<vmem>>, vector<1x64xf32>
    %cst_19 = arith.constant dense<0.000000e+00> : vector<1x8xf32>
    %20 = tpu.matmul %19, %18, %cst_19 {dimension_numbers = #tpu.dot_dimension_numbers<[1], [1], [0], [0], [0, 0, 1, 0], [], []>} : vector<1x64xf32>, vector<8x64xf32>, vector<1x8xf32> -> vector<1x8xf32>
    %c0_20 = arith.constant 0 : index
    %c0_21 = arith.constant 0 : index
    %21 = memref.load %arg9[%c0_20, %c0_21] : memref<1x1xf32, #tpu.memory_space<smem>>
    %22 = vector.broadcast %21 : f32 to vector<1x8xf32>
    %23 = arith.addf %20, %22 : vector<1x8xf32>
    %c0_22 = arith.constant 0 : index
    %c0_23 = arith.constant 0 : index
    %24 = vector.load %arg10[%c0_22, %c0_23] : memref<1x8xf32, #tpu.memory_space<vmem>>, vector<1x8xf32>
    tpu.vector_store %arg10[%c0_22, %c0_23], %23 {strides = array<i32>} : memref<1x8xf32, #tpu.memory_space<vmem>>, vector<1x8xf32>,
    return
  }
  func.func @transform_0(%arg0: i32) -> (i32, i32) {
    %c0_i32 = arith.constant 0 : i32
    %c0_i32_0 = arith.constant 0 : i32
    return %arg0, %c0_i32 : i32, i32
  }
  func.func @transform_1(%arg0: i32) -> (i32, i32) {
    %c0_i32 = arith.constant 0 : i32
    %c0_i32_0 = arith.constant 0 : i32
    return %arg0, %c0_i32 : i32, i32
  }
  func.func @transform_2(%arg0: i32) -> (i32, i32) {
    %c0_i32 = arith.constant 0 : i32
    %c0_i32_0 = arith.constant 0 : i32
    %c0_i32_1 = arith.constant 0 : i32
    return %c0_i32, %c0_i32_0 : i32, i32
  }
  func.func @transform_3(%arg0: i32) -> (i32, i32) {
    %c0_i32 = arith.constant 0 : i32
    %c0_i32_0 = arith.constant 0 : i32
    %c0_i32_1 = arith.constant 0 : i32
    return %c0_i32, %c0_i32_0 : i32, i32
  }
  func.func @transform_4(%arg0: i32) -> (i32, i32) {
    %c0_i32 = arith.constant 0 : i32
    %c0_i32_0 = arith.constant 0 : i32
    %c0_i32_1 = arith.constant 0 : i32
    return %c0_i32, %c0_i32_0 : i32, i32
  }
  func.func @transform_5(%arg0: i32) -> (i32, i32) {
    %c0_i32 = arith.constant 0 : i32
    %c0_i32_0 = arith.constant 0 : i32
    %c0_i32_1 = arith.constant 0 : i32
    return %c0_i32, %c0_i32_0 : i32, i32
  }
  func.func @transform_6(%arg0: i32) -> (i32, i32) {
    %c0_i32 = arith.constant 0 : i32
    %c0_i32_0 = arith.constant 0 : i32
    %c0_i32_1 = arith.constant 0 : i32
    return %c0_i32, %c0_i32_0 : i32, i32
  }
  func.func @transform_7(%arg0: i32) -> (i32, i32) {
    %c0_i32 = arith.constant 0 : i32
    %c0_i32_0 = arith.constant 0 : i32
    %c0_i32_1 = arith.constant 0 : i32
    return %c0_i32, %c0_i32_0 : i32, i32
  }
  func.func @transform_8(%arg0: i32) -> (i32, i32) {
    %c0_i32 = arith.constant 0 : i32
    %c0_i32_0 = arith.constant 0 : i32
    %c0_i32_1 = arith.constant 0 : i32
    return %c0_i32, %c0_i32_0 : i32, i32
  }
  func.func @transform_9(%arg0: i32) -> (i32, i32) {
    %c0_i32 = arith.constant 0 : i32
    %c0_i32_0 = arith.constant 0 : i32
    return %c0_i32, %arg0 : i32, i32
  }
}

</mosaic_0001>

<llo_original>
// kernel: tpu_custom_call.1
$region0: #{tpu_custom_call.1}
  #allocation0 [shape = 'u32[]', space=smem, size = 0x4, offset = 0x4, fixed_abs, tag = 'smem constant byte address 0x4 - core index']
  #allocation1 [shape = 'u32[72,128]{1,0:T(1,128)}', space=vmem, size = 0x9000, scoped, tag = 'internal scratch']
  #allocation2 [shape = 'f32[1,1]{1,0:T(1,128)S(6)}', space=smem, size = 0x200, scoped, tag = 'scoped memory for tpu_custom_call.1']
  %s0 = inlined_call_operand.hbm [shape: f32[8,8], index: 0, kind: input, shape index: {}]
  %s1 = inlined_call_operand.hbm [shape: f32[8,8], index: 1, kind: input, shape index: {}]
  %s2 = inlined_call_operand.hbm [shape: f32[8,64], index: 2, kind: input, shape index: {}]
  %s3 = inlined_call_operand.hbm [shape: f32[8,64], index: 3, kind: input, shape index: {}]
  %s4 = inlined_call_operand.vmem [shape: f32[1,64], index: 4, kind: input, shape index: {}]
  %s5 = inlined_call_operand.hbm [shape: f32[64,64], index: 5, kind: input, shape index: {}]
  %s6 = inlined_call_operand.vmem [shape: f32[1,64], index: 6, kind: input, shape index: {}]
  %s7 = inlined_call_operand.vmem [shape: f32[1,64], index: 7, kind: input, shape index: {}]
  %s8 = inlined_call_operand.<no memory space> [shape: f32[1,1], index: 8, kind: input, shape index: {}]
  %s9 = inlined_call_operand.hbm [shape: f32[1,8], index: 9, kind: output, shape index: {}]
  %s10 = sld [smem:[#allocation0]]
  $region66: #{tpu_custom_call.1} parent=0
    _
  %s12 = ssub.s32 1, %s10
  %s13 = scalar_select 0, %s12, %s10
  %14 = sst [smem:[#allocation2]] %s8
  $region1: #{tpu_custom_call.1} parent=0
    #allocation3 [shape = 'u8[4096]{0}', space=vmem, size = 0x1000, scoped, tag = 'input window, operand 0, single buffered']
    #allocation4 [shape = 's32[1]{0}', space=sflag, size = 0x4, scoped, tag = 'scoped memory for tpu_custom_call.1']
    #allocation5 [shape = 's32[1]{0}', space=sflag, size = 0x4, scoped, tag = 'scoped memory for tpu_custom_call.1']
    #allocation6 [shape = 'u8[4096]{0}', space=vmem, size = 0x1000, scoped, tag = 'input window, operand 1, single buffered']
    #allocation7 [shape = 's32[1]{0}', space=sflag, size = 0x4, scoped, tag = 'scoped memory for tpu_custom_call.1']
    #allocation8 [shape = 'u8[4096]{0}', space=vmem, size = 0x1000, scoped, tag = 'input window, operand 2, single buffered']
    #allocation9 [shape = 'u8[4096]{0}', space=vmem, size = 0x1000, scoped, tag = 'input window, operand 3, single buffered']
    #allocation10 [shape = 's32[1]{0}', space=sflag, size = 0x4, scoped, tag = 'scoped memory for tpu_custom_call.1']
    #allocation11 [shape = 'u8[32768]{0}', space=vmem, size = 0x8000, scoped, tag = 'input window, operand 5, single buffered']
    #allocation12 [shape = 'u8[512]{0}', space=vmem, size = 0x400, scoped, tag = 'output window, operand 0, single buffered']
    %15 = vsyncpa [#allocation4], 0
    %16 = vsyncpa [#allocation7], 0
    %17 = vsyncpa [#allocation10], 0
    %18 = vsyncpa [#allocation5], 0
    // Predicated region
    $region2: #{tpu_custom_call.1} parent=1 // pred_check
      _
    $region3: #{tpu_custom_call.1} parent=1 // pred_check_branch
      %20 = sbr.rel (0) target = $region5
    $region4: #{tpu_custom_call.1} parent=1 // pred_region
      %22 = vsyncadd [#allocation4], 0
      %s24 = sshll.u32 %s0, 4
      %s25 = int_to_ptr.hbm [resolvable:$true] %s24
      %s26 = sshll.u32 [#allocation3], 4
      %s27 = int_to_ptr.vmem [resolvable:$true] %s26
      %29 = dma.hbm_to_vmem [thread:$0]  %s25, 128, %s27, [#allocation4]
    $region5: #{tpu_custom_call.1} parent=1 // pred_fallthru
      _
    // Predicated region
    $region6: #{tpu_custom_call.1} parent=1 // pred_check
      _
    $region7: #{tpu_custom_call.1} parent=1 // pred_check_branch
      %31 = sbr.rel (0) target = $region9
    $region8: #{tpu_custom_call.1} parent=1 // pred_region
      %33 = vsyncadd [#allocation7], 0
      %s35 = sshll.u32 %s1, 4
      %s36 = int_to_ptr.hbm [resolvable:$true] %s35
      %s37 = sshll.u32 [#allocation6], 4
      %s38 = int_to_ptr.vmem [resolvable:$true] %s37
      %40 = dma.hbm_to_vmem [thread:$0]  %s36, 128, %s38, [#allocation7]
    $region9: #{tpu_custom_call.1} parent=1 // pred_fallthru
      _
    // Predicated region
    $region10: #{tpu_custom_call.1} parent=1 // pred_check
      _
    $region11: #{tpu_custom_call.1} parent=1 // pred_check_branch
      %42 = sbr.rel (0) target = $region13
    $region12: #{tpu_custom_call.1} parent=1 // pred_region
      %44 = vsyncadd [#allocation7], 0
      %s46 = sshll.u32 %s2, 4
      %s47 = int_to_ptr.hbm [resolvable:$true] %s46
      %s48 = sshll.u32 [#allocation8], 4
      %s49 = int_to_ptr.vmem [resolvable:$true] %s48
      %51 = dma.hbm_to_vmem [thread:$0]  %s47, 128, %s49, [#allocation7]
    $region13: #{tpu_custom_call.1} parent=1 // pred_fallthru
      _
    // Predicated region
    $region14: #{tpu_custom_call.1} parent=1 // pred_check
      _
    $region15: #{tpu_custom_call.1} parent=1 // pred_check_branch
      %53 = sbr.rel (0) target = $region17
    $region16: #{tpu_custom_call.1} parent=1 // pred_region
      %55 = vsyncadd [#allocation10], 0
      %s57 = sshll.u32 %s3, 4
      %s58 = int_to_ptr.hbm [resolvable:$true] %s57
      %s59 = sshll.u32 [#allocation9], 4
      %s60 = int_to_ptr.vmem [resolvable:$true] %s59
      %62 = dma.hbm_to_vmem [thread:$0]  %s58, 128, %s60, [#allocation10]
    $region17: #{tpu_custom_call.1} parent=1 // pred_fallthru
      _
    // Predicated region
    $region18: #{tpu_custom_call.1} parent=1 // pred_check
      _
    $region19: #{tpu_custom_call.1} parent=1 // pred_check_branch
      %64 = sbr.rel (0) target = $region21
    $region20: #{tpu_custom_call.1} parent=1 // pred_region
      _
    $region21: #{tpu_custom_call.1} parent=1 // pred_fallthru
      _
    // Predicated region
    $region22: #{tpu_custom_call.1} parent=1 // pred_check
      _
    $region23: #{tpu_custom_call.1} parent=1 // pred_check_branch
      %66 = sbr.rel (0) target = $region25
    $region24: #{tpu_custom_call.1} parent=1 // pred_region
      %68 = vsyncadd [#allocation10], 0
      %s69 = sshll.u32 %s5, 4
      %s70 = int_to_ptr.hbm [resolvable:$true] %s69
      %s71 = sshll.u32 [#allocation11], 4
      %s72 = int_to_ptr.vmem [resolvable:$true] %s71
      %77 = dma.hbm_to_vmem [thread:$0]  %s70, 1024, %s72, [#allocation10], 128, 128, 8
    $region25: #{tpu_custom_call.1} parent=1 // pred_fallthru
      _
    // Predicated region
    $region26: #{tpu_custom_call.1} parent=1 // pred_check
      _
    $region27: #{tpu_custom_call.1} parent=1 // pred_check_branch
      %79 = sbr.rel (0) target = $region29
    $region28: #{tpu_custom_call.1} parent=1 // pred_region
      _
    $region29: #{tpu_custom_call.1} parent=1 // pred_fallthru
      _
    // Predicated region
    $region30: #{tpu_custom_call.1} parent=1 // pred_check
      _
    $region31: #{tpu_custom_call.1} parent=1 // pred_check_branch
      %81 = sbr.rel (0) target = $region33
    $region32: #{tpu_custom_call.1} parent=1 // pred_region
      _
    $region33: #{tpu_custom_call.1} parent=1 // pred_fallthru
      _
    // Predicated region
    $region34: #{tpu_custom_call.1} parent=1 // pred_check
      _
    $region35: #{tpu_custom_call.1} parent=1 // pred_check_branch
      %83 = sbr.rel (0) target = $region37
    $region36: #{tpu_custom_call.1} parent=1 // pred_region
      _
    $region37: #{tpu_custom_call.1} parent=1 // pred_fallthru
      _
    // Predicated region
    $region38: #{tpu_custom_call.1} parent=1 // pred_check
      _
    $region39: #{tpu_custom_call.1} parent=1 // pred_check_branch
      %85 = sbr.rel (0) target = $region41
    $region40: #{tpu_custom_call.1} parent=1 // pred_region
      %87 = dma.done [#allocation4], 128
    $region41: #{tpu_custom_call.1} parent=1 // pred_fallthru
      _
    // Predicated region
    $region42: #{tpu_custom_call.1} parent=1 // pred_check
      _
    $region43: #{tpu_custom_call.1} parent=1 // pred_check_branch
      %89 = sbr.rel (0) target = $region45
    $region44: #{tpu_custom_call.1} parent=1 // pred_region
      %91 = dma.done [#allocation7], 128
    $region45: #{tpu_custom_call.1} parent=1 // pred_fallthru
      _
    // Predicated region
    $region46: #{tpu_custom_call.1} parent=1 // pred_check
      _
    $region47: #{tpu_custom_call.1} parent=1 // pred_check_branch
      %93 = sbr.rel (0) target = $region49
    $region48: #{tpu_custom_call.1} parent=1 // pred_region
      %95 = dma.done [#allocation7], 128
    $region49: #{tpu_custom_call.1} parent=1 // pred_fallthru
      _
    // Predicated region
    $region50: #{tpu_custom_call.1} parent=1 // pred_check
      _
    $region51: #{tpu_custom_call.1} parent=1 // pred_check_branch
      %97 = sbr.rel (0) target = $region53
    $region52: #{tpu_custom_call.1} parent=1 // pred_region
      %99 = dma.done [#allocation10], 128
    $region53: #{tpu_custom_call.1} parent=1 // pred_fallthru
      _
    // Predicated region
    $region54: #{tpu_custom_call.1} parent=1 // pred_check
      _
    $region55: #{tpu_custom_call.1} parent=1 // pred_check_branch
      %101 = sbr.rel (0) target = $region57
    $region56: #{tpu_custom_call.1} parent=1 // pred_region
      %103 = dma.done [#allocation10], 1024
    $region57: #{tpu_custom_call.1} parent=1 // pred_fallthru
      _
    %v104 = vld [vmem:[#allocation3] sm:$0xff]
    %v105 = vld [vmem:[#allocation8] sm:$0xff]
    %v106 = vld [vmem:[#allocation6] sm:$0xff]
    %v107 = vld [vmem:[#allocation9] sm:$0xff]
    %vm108 = vcmask 64512
    %v110 = vsel %vm108, %v106, 0
    %112 = vmatpush.msra.mxu0 0.0
    %113 = vmatpush.msra.mxu0 0.0
    %114 = vmatpush.msra.mxu0 0.0
    %115 = vmatpush.msra.mxu0 0.0
    %116 = vmatpush.msra.mxu0 0.0
    %117 = vmatpush.msra.mxu0 0.0
    %118 = vmatpush.msra.mxu0 0.0
    %119 = vmatpush.msra.mxu0 0.0
    %120 = vmatpush.msra.mxu0 0.0
    %121 = vmatpush.msra.mxu0 0.0
    %122 = vmatpush.msra.mxu0 0.0
    %123 = vmatpush.msra.mxu0 0.0
    %124 = vmatpush.msra.mxu0 0.0
    %125 = vmatpush.msra.mxu0 0.0
    %126 = vmatpush.msra.mxu0 0.0
    %127 = vmatpush.msra.mxu0 %v107
    %128 = vmatmul.f32.gmra.mxu0 %v110
    %v129 = vpop.f32.mrf.mxu0
    %v130 = vadd.f32 0.0, %v129
    %131 = vdwg.mxu0
    %v133 = vsel %vm108, %v104, 0
    %135 = vmatpush.msra.mxu0 0.0
    %136 = vmatpush.msra.mxu0 0.0
    %137 = vmatpush.msra.mxu0 0.0
    %138 = vmatpush.msra.mxu0 0.0
    %139 = vmatpush.msra.mxu0 0.0
    %140 = vmatpush.msra.mxu0 0.0
    %141 = vmatpush.msra.mxu0 0.0
    %142 = vmatpush.msra.mxu0 0.0
    %143 = vmatpush.msra.mxu0 0.0
    %144 = vmatpush.msra.mxu0 0.0
    %145 = vmatpush.msra.mxu0 0.0
    %146 = vmatpush.msra.mxu0 0.0
    %147 = vmatpush.msra.mxu0 0.0
    %148 = vmatpush.msra.mxu0 0.0
    %149 = vmatpush.msra.mxu0 0.0
    %150 = vmatpush.msra.mxu0 %v105
    %151 = vmatmul.f32.gmra.mxu0 %v133
    %v152 = vpop.f32.mrf.mxu0
    %v153 = vadd.f32 %v130, %v152
    %154 = vdwg.mxu0
    %v155 = vld [vmem:[%s4] sm:$0x1]
    %v157 = vperm.slane %v155, 0
    %v159 = vadd.f32 %v153, %v157
    %v160 = vmax.f32 %v159, 0.0
    %v161 = vld [vmem:[#allocation11] sm:$0xff]
    %v162 = vld [vmem:[#allocation11 + $0x8] sm:$0xff]
    %v163 = vld [vmem:[#allocation11 + $0x10] sm:$0xff]
    %v164 = vld [vmem:[#allocation11 + $0x18] sm:$0xff]
    %v165 = vld [vmem:[#allocation11 + $0x20] sm:$0xff]
    %v166 = vld [vmem:[#allocation11 + $0x28] sm:$0xff]
    %v167 = vld [vmem:[#allocation11 + $0x30] sm:$0xff]
    %v168 = vld [vmem:[#allocation11 + $0x38] sm:$0xff]
    %v169 = vld [vmem:[%s6] sm:$0x1]
    %v171 = vperm.slane %v169, 0
    %vm173 = vcmask 523264
    %v175 = vsel %vm173, %v160, 0
    %177 = vmatpush.msra.mxu0 0.0
    %178 = vmatpush.msra.mxu0 0.0
    %179 = vmatpush.msra.mxu0 0.0
    %180 = vmatpush.msra.mxu0 0.0
    %181 = vmatpush.msra.mxu0 0.0
    %182 = vmatpush.msra.mxu0 0.0
    %183 = vmatpush.msra.mxu0 0.0
    %184 = vmatpush.msra.mxu0 0.0
    %185 = vmatpush.msra.mxu0 %v168
    %186 = vmatpush.msra.mxu0 %v167
    %187 = vmatpush.msra.mxu0 %v166
    %188 = vmatpush.msra.mxu0 %v165
    %189 = vmatpush.msra.mxu0 %v164
    %190 = vmatpush.msra.mxu0 %v163
    %191 = vmatpush.msra.mxu0 %v162
    %192 = vmatpush.msra.mxu0 %v161
    %193 = vmatmul.f32.gmra.mxu0 %v175
    %v194 = vpop.f32.mrf.mxu0
    %v195 = vadd.f32 %v171, %v194
    %196 = vdwg.mxu0
    %v197 = vmax.f32 %v195, 0.0
    %v198 = vld [vmem:[%s7] sm:$0x1]
    %s199 = sld [smem:[#allocation2]]
    %v200 = vstv %s199
    %v202 = vsel %vm173, %v198, 0
    %v205 = vsel %vm173, %v197, 0
    %207 = vmatpush.xpose.msra.mxu0 0.0
    %208 = vmatpush.xpose.msra.mxu0 0.0
    %209 = vmatpush.xpose.msra.mxu0 0.0
    %210 = vmatpush.xpose.msra.mxu0 0.0
    %211 = vmatpush.xpose.msra.mxu0 0.0
    %212 = vmatpush.xpose.msra.mxu0 0.0
    %213 = vmatpush.xpose.msra.mxu0 0.0
    %214 = vmatpush.xpose.msra.mxu0 0.0
    %215 = vmatpush.xpose.msra.mxu0 0.0
    %216 = vmatpush.xpose.msra.mxu0 0.0
    %217 = vmatpush.xpose.msra.mxu0 0.0
    %218 = vmatpush.xpose.msra.mxu0 0.0
    %219 = vmatpush.xpose.msra.mxu0 0.0
    %220 = vmatpush.xpose.msra.mxu0 0.0
    %221 = vmatpush.xpose.msra.mxu0 0.0
    %222 = vmatpush.xpose.msra.mxu0 %v205
    %223 = vmatmul.f32.gmra.mxu0 %v202
    %v224 = vpop.f32.mrf.mxu0
    %v225 = vadd.f32 %v200, %v224
    %226 = vdwg.mxu0
    %vm227 = vcmask 57344
    %228 = vst.msk [vmem:[#allocation12] sm:$0x1] %vm227, %v225
    // Predicated region
    $region58: #{tpu_custom_call.1} parent=1 // pred_check
      _
    $region59: #{tpu_custom_call.1} parent=1 // pred_check_branch
      %230 = sbr.rel (0) target = $region61
    $region60: #{tpu_custom_call.1} parent=1 // pred_region
      %232 = vsyncadd [#allocation5], 0
      %s234 = sshll.u32 [#allocation12], 4
      %s235 = int_to_ptr.vmem [resolvable:$true] %s234
      %s236 = sshll.u32 %s9, 4
      %s237 = int_to_ptr.hbm [resolvable:$true] %s236
      %239 = dma.vmem_to_hbm [thread:$0]  %s235, 16, %s237, [#allocation5]
    $region61: #{tpu_custom_call.1} parent=1 // pred_fallthru
      _
    // Predicated region
    $region62: #{tpu_custom_call.1} parent=1 // pred_check
      _
    $region63: #{tpu_custom_call.1} parent=1 // pred_check_branch
      %241 = sbr.rel (0) target = $region65
    $region64: #{tpu_custom_call.1} parent=1 // pred_region
      %243 = dma.done [#allocation5], 16
    $region65: #{tpu_custom_call.1} parent=1 // pred_fallthru
      _
    %244 = vsyncpa [#allocation4], 1
    %245 = vsyncpa [#allocation7], 1
    %246 = vsyncpa [#allocation10], 1
    %247 = vsyncpa [#allocation5], 1

</llo_original>
